<compile_context>
chip_gen: v6e
topology: v6e:2x2x1
jax: 0.10.0
libtpu: 0.0.40
codegen_flags: <defaults>
</compile_context>

<pallas_src>
import jax
import jax.numpy as jnp
from jax.experimental import pallas as pl
from jax.experimental.pallas import tpu as pltpu

# ---------------- configuration (torchaudio defaults) ----------------
SAMPLE_RATE = 8000
N_FFT = 400                  # torchaudio MelSpectrogram default n_fft
WIN_LENGTH = 160
HOP_LENGTH = 80
N_MELS = 128
N_FREQS = N_FFT // 2 + 1     # 201 (onesided)
F_MIN = 0.0
F_MAX = SAMPLE_RATE / 2.0
LOG_EPS = 1e-14

WIN_OFFSET = (N_FFT - WIN_LENGTH) // 2   # 120: Hann support inside the 400 frame
K_PAD = 256                  # 160 nonzero window samples padded to 256 lanes
N_FREQ_PAD = 256             # 201 freq bins padded to 256 lanes
T_TILE_MAX = 512             # frames per kernel step (multiple of 128)


def _round_up(x, m):
    return (x + m - 1) // m * m


# ---------------- deterministic parameter construction ----------------
def _hann_window_periodic(win_length):
    n = jnp.arange(win_length, dtype=jnp.float32)
    return 0.5 - 0.5 * jnp.cos(2.0 * jnp.pi * n / win_length)


def _windowed_dft_matrix():
    """Single (K_PAD, 2*N_FREQ_PAD) bf16 matrix [cos | sin] with the Hann
    window folded in. Only the 160 rows of the window support are nonzero;
    re = frames @ M[:, :256], im = frames @ M[:, 256:]."""
    w = _hann_window_periodic(WIN_LENGTH)                              # (160,)
    n = (WIN_OFFSET + jnp.arange(WIN_LENGTH, dtype=jnp.float32))[:, None]
    k = jnp.arange(N_FREQS, dtype=jnp.float32)[None, :]
    ang = 2.0 * jnp.pi * n * k / N_FFT
    cos_m = jnp.cos(ang) * w[:, None]                                  # (160, 201)
    sin_m = jnp.sin(ang) * w[:, None]   # sign irrelevant after squaring

    m = jnp.zeros((K_PAD, 2 * N_FREQ_PAD), jnp.float32)
    m = m.at[:WIN_LENGTH, :N_FREQS].set(cos_m)
    m = m.at[:WIN_LENGTH, N_FREQ_PAD:N_FREQ_PAD + N_FREQS].set(sin_m)
    return m.astype(jnp.bfloat16)


def _melscale_fbanks():
    """HTK mel filterbank, norm=None (torchaudio melscale_fbanks), padded to
    (N_FREQ_PAD, N_MELS), bf16."""
    def hz_to_mel(f):
        return 2595.0 * jnp.log10(1.0 + f / 700.0)

    def mel_to_hz(m):
        return 700.0 * (jnp.power(10.0, m / 2595.0) - 1.0)

    all_freqs = jnp.linspace(0.0, SAMPLE_RATE / 2.0, N_FREQS)
    m_min = hz_to_mel(jnp.asarray(F_MIN, jnp.float32))
    m_max = hz_to_mel(jnp.asarray(F_MAX, jnp.float32))
    m_pts = jnp.linspace(m_min, m_max, N_MELS + 2)
    f_pts = mel_to_hz(m_pts)

    f_diff = f_pts[1:] - f_pts[:-1]                        # (n_mels + 1,)
    slopes = f_pts[None, :] - all_freqs[:, None]           # (n_freqs, n_mels + 2)
    down_slopes = -slopes[:, :-2] / f_diff[:-1]
    up_slopes = slopes[:, 2:] / f_diff[1:]
    fb = jnp.maximum(0.0, jnp.minimum(down_slopes, up_slopes))  # (n_freqs, n_mels)

    fb_p = jnp.zeros((N_FREQ_PAD, N_MELS), jnp.float32)
    fb_p = fb_p.at[:N_FREQS, :].set(fb.astype(jnp.float32))
    return fb_p.astype(jnp.bfloat16)


# ---------------- JAX glue: center pad + frame extraction ----------------
def _frame_signal(x, t_pad):
    """x: (B, time) -> frames: (B, t_pad, K_PAD) bf16.
    Only the 160-sample Hann support of each 400-sample frame is extracted."""
    pad = N_FFT // 2
    xp = jnp.pad(x.astype(jnp.float32), ((0, 0), (pad, pad)), mode="reflect")
    n_frames = 1 + x.shape[1] // HOP_LENGTH
    idx = (jnp.arange(n_frames)[:, None] * HOP_LENGTH
           + WIN_OFFSET + jnp.arange(WIN_LENGTH)[None, :])   # (T, 160)
    frames = xp[:, idx]                                      # (B, T, 160)
    frames = jnp.pad(
        frames, ((0, 0), (0, t_pad - n_frames), (0, K_PAD - WIN_LENGTH)))
    return frames.astype(jnp.bfloat16)                       # halve HBM traffic


# ---------------- Pallas kernel ----------------
def _logmel_kernel(frames_ref, dft_ref, mel_ref, out_ref):
    f = frames_ref[0]                                        # (T_TILE, K_PAD) bf16
    # one MXU pass over frames against [cos | sin], f32 accumulation
    y = jnp.dot(f, dft_ref[...], preferred_element_type=jnp.float32)
    re = y[:, :N_FREQ_PAD]                                   # 256-lane boundary slice
    im = y[:, N_FREQ_PAD:]
    power = re * re + im * im                                # (T_TILE, N_FREQ_PAD) f32
    mel = jnp.dot(power.astype(jnp.bfloat16), mel_ref[...],
                  preferred_element_type=jnp.float32)        # (T_TILE, N_MELS)
    # fold the (n_mels, frames) transpose into the store (lane-dense, T_TILE%128==0)
    out_ref[0] = jnp.log(mel + LOG_EPS).T                    # (N_MELS, T_TILE)


def log_mel_spec(x, t_tile=T_TILE_MAX):
    """x: (B, time) float32 waveform -> (B, n_mels, n_frames) float32."""
    B, time = x.shape
    n_frames = 1 + time // HOP_LENGTH
    t_tile = min(t_tile, _round_up(n_frames, 128))   # keep a multiple of 128
    t_pad = _round_up(n_frames, t_tile)

    frames = _frame_signal(x, t_pad)                 # (B, t_pad, K_PAD) bf16
    dft = _windowed_dft_matrix()                     # (K_PAD, 2*N_FREQ_PAD) bf16
    mel_fb = _melscale_fbanks()                      # (N_FREQ_PAD, N_MELS) bf16

    out = pl.pallas_call(
        _logmel_kernel,
        out_shape=jax.ShapeDtypeStruct((B, N_MELS, t_pad), jnp.float32),
        grid_spec=pltpu.PrefetchScalarGridSpec(
            num_scalar_prefetch=0,
            grid=(B, t_pad // t_tile),
            in_specs=[
                pl.BlockSpec((1, t_tile, K_PAD), lambda b, t: (b, t, 0)),
                pl.BlockSpec((K_PAD, 2 * N_FREQ_PAD), lambda b, t: (0, 0)),
                pl.BlockSpec((N_FREQ_PAD, N_MELS), lambda b, t: (0, 0)),
            ],
            out_specs=pl.BlockSpec((1, N_MELS, t_tile), lambda b, t: (b, 0, t)),
        ),
        compiler_params=pltpu.CompilerParams(
            dimension_semantics=("parallel", "parallel")),
    )(frames, dft, mel_fb)

    # drop the padded frame columns; output is already (B, n_mels, n_frames) layout
    return out[:, :, :n_frames]


if __name__ == "__main__":
    key = jax.random.PRNGKey(0)
    # batch=2 waveforms of 800 samples -> 1 + 800//80 = 11 frames
    x = jax.random.normal(key, (2, 800), dtype=jnp.float32)
    y = jax.block_until_ready(log_mel_spec(x))
    assert y.shape == (2, N_MELS, 11), y.shape
    assert y.dtype == jnp.float32
    assert bool(jnp.all(jnp.isfinite(y)))
    print("KERNEL_OK")
</pallas_src>

<mosaic_0001>
module attributes {stable_mosaic.version = 11 : i64} {
  func.func @_logmel_kernel(%arg0: i32, %arg1: i32, %arg2: memref<1x128x256xbf16, #tpu.memory_space<vmem>>, %arg3: memref<256x512xbf16, #tpu.memory_space<vmem>>, %arg4: memref<256x128xbf16, #tpu.memory_space<vmem>>, %arg5: memref<1x128x128xf32, #tpu.memory_space<vmem>>) attributes {dimension_semantics = [#tpu.dimension_semantics<parallel>, #tpu.dimension_semantics<parallel>], iteration_bounds = array<i64: 2, 1>, scalar_prefetch = 0 : i64, scratch_operands = 0 : i64, tpu.core_type = #tpu.core_type<tc>, window_params = [{transform_indices = @transform_0, window_bounds = array<i64: 1, 128, 256>}, {pipeline_mode = #tpu.pipeline_mode<synchronous>, transform_indices = @transform_1, window_bounds = array<i64: 256, 512>}, {pipeline_mode = #tpu.pipeline_mode<synchronous>, transform_indices = @transform_2, window_bounds = array<i64: 256, 128>}, {transform_indices = @transform_3, window_bounds = array<i64: 1, 128, 128>}]} {
    %c0 = arith.constant 0 : index
    %c0_0 = arith.constant 0 : index
    %c0_1 = arith.constant 0 : index
    %0 = vector.load %arg2[%c0, %c0_0, %c0_1] : memref<1x128x256xbf16, #tpu.memory_space<vmem>>, vector<1x128x256xbf16>
    %1 = vector.shape_cast %0 : vector<1x128x256xbf16> to vector<128x256xbf16>
    %c0_2 = arith.constant 0 : index
    %c0_3 = arith.constant 0 : index
    %2 = vector.load %arg3[%c0_2, %c0_3] : memref<256x512xbf16, #tpu.memory_space<vmem>>, vector<256x512xbf16>
    %cst = arith.constant dense<0.000000e+00> : vector<128x512xf32>
    %3 = tpu.matmul %1, %2, %cst {dimension_numbers = #tpu.dot_dimension_numbers<[1], [0], [0], [1], [0, 0, 1, 1], [], []>} : vector<128x256xbf16>, vector<256x512xbf16>, vector<128x512xf32> -> vector<128x512xf32>
    %4 = vector.extract_strided_slice %3 {offsets = [0, 0], sizes = [128, 256], strides = [1, 1]} : vector<128x512xf32> to vector<128x256xf32>
    %5 = vector.extract_strided_slice %3 {offsets = [0, 256], sizes = [128, 256], strides = [1, 1]} : vector<128x512xf32> to vector<128x256xf32>
    %6 = arith.mulf %4, %4 : vector<128x256xf32>
    %7 = arith.mulf %5, %5 : vector<128x256xf32>
    %8 = arith.addf %6, %7 : vector<128x256xf32>
    %9 = arith.truncf %8 : vector<128x256xf32> to vector<128x256xbf16>
    %c0_4 = arith.constant 0 : index
    %c0_5 = arith.constant 0 : index
    %10 = vector.load %arg4[%c0_4, %c0_5] : memref<256x128xbf16, #tpu.memory_space<vmem>>, vector<256x128xbf16>
    %cst_6 = arith.constant dense<0.000000e+00> : vector<128x128xf32>
    %11 = tpu.matmul %9, %10, %cst_6 {dimension_numbers = #tpu.dot_dimension_numbers<[1], [0], [0], [1], [0, 0, 1, 1], [], []>} : vector<128x256xbf16>, vector<256x128xbf16>, vector<128x128xf32> -> vector<128x128xf32>
    %cst_7 = arith.constant 9.99999982E-15 : f32
    %12 = vector.broadcast %cst_7 : f32 to vector<128x128xf32>
    %13 = arith.addf %11, %12 : vector<128x128xf32>
    %14 = math.log %13 : vector<128x128xf32>
    %15 = tpu.transpose %14, [1, 0] : vector<128x128xf32> -> vector<128x128xf32>
    %c0_8 = arith.constant 0 : index
    %c0_9 = arith.constant 0 : index
    %c0_10 = arith.constant 0 : index
    %16 = vector.load %arg5[%c0_8, %c0_9, %c0_10] : memref<1x128x128xf32, #tpu.memory_space<vmem>>, vector<1x128x128xf32>
    %17 = vector.shape_cast %16 : vector<1x128x128xf32> to vector<128x128xf32>
    %18 = vector.shape_cast %15 : vector<128x128xf32> to vector<1x128x128xf32>
    tpu.vector_store %arg5[%c0_8, %c0_9, %c0_10], %18 {strides = array<i32>} : memref<1x128x128xf32, #tpu.memory_space<vmem>>, vector<1x128x128xf32>,
    return
  }
  func.func @transform_0(%arg0: i32, %arg1: i32) -> (i32, i32, i32) {
    %c0_i32 = arith.constant 0 : i32
    %c0_i32_0 = arith.constant 0 : i32
    return %arg0, %arg1, %c0_i32 : i32, i32, i32
  }
  func.func @transform_1(%arg0: i32, %arg1: i32) -> (i32, i32) {
    %c0_i32 = arith.constant 0 : i32
    %c0_i32_0 = arith.constant 0 : i32
    %c0_i32_1 = arith.constant 0 : i32
    return %c0_i32, %c0_i32_0 : i32, i32
  }
  func.func @transform_2(%arg0: i32, %arg1: i32) -> (i32, i32) {
    %c0_i32 = arith.constant 0 : i32
    %c0_i32_0 = arith.constant 0 : i32
    %c0_i32_1 = arith.constant 0 : i32
    return %c0_i32, %c0_i32_0 : i32, i32
  }
  func.func @transform_3(%arg0: i32, %arg1: i32) -> (i32, i32, i32) {
    %c0_i32 = arith.constant 0 : i32
    %c0_i32_0 = arith.constant 0 : i32
    return %arg0, %c0_i32, %arg1 : i32, i32, i32
  }
}

</mosaic_0001>

<llo_original>
// kernel: tpu_custom_call.1
$region0: #{tpu_custom_call.1}
  #allocation0 [shape = 'u32[]', space=smem, size = 0x4, offset = 0x4, fixed_abs, tag = 'smem constant byte address 0x4 - core index']
  #allocation1 [shape = 'u32[144,128]{1,0:T(1,128)}', space=vmem, size = 0x12000, scoped, tag = 'internal scratch']
  %s0 = inlined_call_operand.hbm [shape: bf16[2,128,256], index: 0, kind: input, shape index: {}]
  %s1 = inlined_call_operand.hbm [shape: bf16[256,512], index: 1, kind: input, shape index: {}]
  %s2 = inlined_call_operand.hbm [shape: bf16[256,128], index: 2, kind: input, shape index: {}]
  %s3 = inlined_call_operand.hbm [shape: f32[2,128,128], index: 3, kind: output, shape index: {}]
  %s4 = sld [smem:[#allocation0]]
  $region57: #{tpu_custom_call.1} parent=0
    _
  %s6 = ssub.s32 1, %s4
  %s7 = scalar_select 0, %s6, %s4
  $region1: #{tpu_custom_call.1} parent=0
    #allocation2 [shape = 'u8[131072]{0}', space=vmem, size = 0x20000, scoped, tag = 'input window, operand 0']
    #allocation3 [shape = 's32[2]{0}', space=sflag, size = 0x8, scoped, tag = 'scoped memory for tpu_custom_call.1']
    #allocation4 [shape = 's32[2]{0}', space=sflag, size = 0x8, scoped, tag = 'scoped memory for tpu_custom_call.1']
    #allocation5 [shape = 'u8[262144]{0}', space=vmem, size = 0x40000, scoped, tag = 'input window, operand 1, single buffered']
    #allocation6 [shape = 's32[1]{0}', space=sflag, size = 0x4, scoped, tag = 'scoped memory for tpu_custom_call.1']
    #allocation7 [shape = 'u8[65536]{0}', space=vmem, size = 0x10000, scoped, tag = 'input window, operand 2, single buffered']
    #allocation8 [shape = 'u8[131072]{0}', space=vmem, size = 0x20000, scoped, tag = 'output window, operand 0']
    %8 = vsyncpa [#allocation3], 0
    %s9 = scalar_lea.sflag [#allocation3], 1
    %10 = vsyncpa %s9, 0
    %11 = vsyncpa [#allocation6], 0
    %12 = vsyncpa [#allocation4], 0
    %s13 = scalar_lea.sflag [#allocation4], 1
    %14 = vsyncpa %s13, 0
    loop: start=0, step=1, limit=4
    $region2: #{tpu_custom_call.1} parent=1 // loop_pre_header
      _
    $region3: #{tpu_custom_call.1} parent=1 // loop_header
      %s16 = sphi 0, %s20
      %p17 = scmp.ge.s32.totalorder %s16, 4
      %s23 = sphi 0, %s35
      %s24 = sphi 0, %s31
      %s25 = sphi 0, %s23
      %s26 = sphi 0, %s24
      %s27 = sphi 0, %s25
      %s28 = sphi 0, %s26
      %s40 = sphi 0, %s42
      %s43 = sphi 0, %s40
      %s44 = sphi 0, %s43
      %s60 = sphi 0, %s44
      %s64 = sphi 0, %s64
      %s66 = sphi 0, %s64
      %s67 = sphi 0, %s66
      %s81 = sphi 0, %s67
      %s85 = sphi 0, %s85
      %s87 = sphi 0, %s85
      %s88 = sphi 0, %s87
      %s102 = sphi 0, %s88
      %s110 = sphi 0, %s112
      %s113 = sphi 0, %s110
      %s114 = sphi 0, %s113
      %s130 = sphi 0, %s114
    $region4: #{tpu_custom_call.1} parent=1 // loop_header_branch
      %19 = sbr.rel (%p17) target = $region8
    $region5: #{tpu_custom_call.1} parent=1 // loop_body
      %s21 = ssub.s32 %s16, 1
      %s22 = ssub.s32 %s16, 2
      %s29 = sadd.s32 1, %s24
      %p30 = scmp.ge.s32.totalorder %s29, 1
      %s31 = scalar_select %p30, 0, %s29
      %s32 = sadd.s32 1, %s23
      %s33 = scalar_select %p30, %s32, %s23
      %p34 = scmp.ge.s32.totalorder %s33, 2
      %s35 = scalar_select %p34, 0, %s33
      %s36 = ssub.s32 %s23, %s35
      %s37 = ssub.s32 %s24, %s31
      %s38 = sor.u32 %s36, %s37
      %p39 = scmp.eq.s32.totalorder %s38, 0
      %s41 = sadd.s32 %s40, 1
      %s42 = scalar_select %p39, %s40, %s41
      %p45 = pneg %p39
      %p46 = scmp.eq.s32.totalorder %s16, 1
      %p47 = por %p45, %p46
      %p48 = scmp.ne.s32.totalorder %s40, %s43
      %p49 = scmp.eq.s32.totalorder %s16, 0
      %p50 = por %p48, %p49
      %p51 = scmp.ne.s32.totalorder %s40, %s43
      %p52 = scmp.eq.s32.totalorder %s21, 1
      %p53 = por %p51, %p52
      %p54 = scmp.ne.s32.totalorder %s43, %s44
      %p55 = scmp.eq.s32.totalorder %s21, 0
      %p56 = por %p54, %p55
      %p57 = scmp.ne.s32.totalorder %s43, %s44
      %p58 = scmp.eq.s32.totalorder %s22, 1
      %p59 = por %p57, %p58
      %p61 = scmp.ne.s32.totalorder %s44, %s60
      %p62 = scmp.eq.s32.totalorder %s22, 0
      %p63 = por %p61, %p62
      %s65 = sadd.s32 %s64, 1
      %p68 = scmp.eq.s32.totalorder %s16, 1
      %p69 = scmp.ne.s32.totalorder %s64, %s66
      %p70 = scmp.eq.s32.totalorder %s16, 0
      %p71 = por %p69, %p70
      %p72 = scmp.ne.s32.totalorder %s64, %s66
      %p73 = scmp.eq.s32.totalorder %s21, 1
      %p74 = por %p72, %p73
      %p75 = scmp.ne.s32.totalorder %s66, %s67
      %p76 = scmp.eq.s32.totalorder %s21, 0
      %p77 = por %p75, %p76
      %p78 = scmp.ne.s32.totalorder %s66, %s67
      %p79 = scmp.eq.s32.totalorder %s22, 1
      %p80 = por %p78, %p79
      %p82 = scmp.ne.s32.totalorder %s67, %s81
      %p83 = scmp.eq.s32.totalorder %s22, 0
      %p84 = por %p82, %p83
      %s86 = sadd.s32 %s85, 1
      %p89 = scmp.eq.s32.totalorder %s16, 1
      %p90 = scmp.ne.s32.totalorder %s85, %s87
      %p91 = scmp.eq.s32.totalorder %s16, 0
      %p92 = por %p90, %p91
      %p93 = scmp.ne.s32.totalorder %s85, %s87
      %p94 = scmp.eq.s32.totalorder %s21, 1
      %p95 = por %p93, %p94
      %p96 = scmp.ne.s32.totalorder %s87, %s88
      %p97 = scmp.eq.s32.totalorder %s21, 0
      %p98 = por %p96, %p97
      %p99 = scmp.ne.s32.totalorder %s87, %s88
      %p100 = scmp.eq.s32.totalorder %s22, 1
      %p101 = por %p99, %p100
      %p103 = scmp.ne.s32.totalorder %s88, %s102
      %p104 = scmp.eq.s32.totalorder %s22, 0
      %p105 = por %p103, %p104
      %s106 = ssub.s32 %s23, %s35
      %s107 = ssub.s32 %s24, %s31
      %s108 = sor.u32 %s106, %s107
      %p109 = scmp.eq.s32.totalorder %s108, 0
      %s111 = sadd.s32 %s110, 1
      %s112 = scalar_select %p109, %s110, %s111
      %p115 = pneg %p109
      %p116 = scmp.eq.s32.totalorder %s16, 1
      %p117 = por %p115, %p116
      %p118 = scmp.ne.s32.totalorder %s110, %s113
      %p119 = scmp.eq.s32.totalorder %s16, 0
      %p120 = por %p118, %p119
      %p121 = scmp.ne.s32.totalorder %s110, %s113
      %p122 = scmp.eq.s32.totalorder %s21, 1
      %p123 = por %p121, %p122
      %p124 = scmp.ne.s32.totalorder %s113, %s114
      %p125 = scmp.eq.s32.totalorder %s21, 0
      %p126 = por %p124, %p125
      %p127 = scmp.ne.s32.totalorder %s113, %s114
      %p128 = scmp.eq.s32.totalorder %s22, 1
      %p129 = por %p127, %p128
      %p131 = scmp.ne.s32.totalorder %s114, %s130
      %p132 = scmp.eq.s32.totalorder %s22, 0
      %p133 = por %p131, %p132
      %p134 = scmp.le.s32.totalorder 1, %s16
      %p135 = scmp.lt.s32.totalorder %s16, 3
      %p136 = pnand %p134, %p135
      %p137 = pneg %p136
      // Predicated region
      $region9: #{tpu_custom_call.1} parent=5 // pred_check
        _
      $region10: #{tpu_custom_call.1} parent=5 // pred_check_branch
        %139 = sbr.rel (%p136) target = $region12
      $region11: #{tpu_custom_call.1} parent=5 // pred_region
        %s140 = ssub.s32 %s16, 1
        // Predicated region
        $region13: #{tpu_custom_call.1} parent=11 // pred_check
          %p141 = pneg %p77
        $region14: #{tpu_custom_call.1} parent=11 // pred_check_branch
          %143 = sbr.rel (%p141) target = $region16
        $region15: #{tpu_custom_call.1} parent=11 // pred_region
          %s145 = ssub.s32 8192, 8192
          %146 = vsyncadd [#allocation6], %s145
          %s147 = sshll.u32 [#allocation5], 4
          %s148 = int_to_ptr.vmem [resolvable:$true] %s147
          %153 = dma.hbm_to_vmem [thread:$0]  %s1, 8192, %s148, [#allocation6], 256, 256, 16
        $region16: #{tpu_custom_call.1} parent=11 // pred_fallthru
          _
        // Predicated region
        $region17: #{tpu_custom_call.1} parent=11 // pred_check
          %p154 = pneg %p98
        $region18: #{tpu_custom_call.1} parent=11 // pred_check_branch
          %156 = sbr.rel (%p154) target = $region20
        $region19: #{tpu_custom_call.1} parent=11 // pred_region
          %s158 = ssub.s32 2048, 2048
          %159 = vsyncadd [#allocation6], %s158
          %s160 = sshll.u32 [#allocation7], 4
          %s161 = int_to_ptr.vmem [resolvable:$true] %s160
          %166 = dma.hbm_to_vmem [thread:$0]  %s2, 2048, %s161, [#allocation6], 64, 64, 4
        $region20: #{tpu_custom_call.1} parent=11 // pred_fallthru
          _
      $region12: #{tpu_custom_call.1} parent=5 // pred_fallthru
        _
      %p167 = scmp.lt.s32.totalorder %s16, 2
      // Predicated region
      $region21: #{tpu_custom_call.1} parent=5 // pred_check
        %p168 = pneg %p167
      $region22: #{tpu_custom_call.1} parent=5 // pred_check_branch
        %170 = sbr.rel (%p168) target = $region24
      $region23: #{tpu_custom_call.1} parent=5 // pred_region
        // Predicated region
        $region25: #{tpu_custom_call.1} parent=23 // pred_check
          %p171 = pneg %p50
        $region26: #{tpu_custom_call.1} parent=23 // pred_check_branch
          %173 = sbr.rel (%p171) target = $region28
        $region27: #{tpu_custom_call.1} parent=23 // pred_region
          %s174 = sand.u32 %s40, 1
          %s175 = scalar_lea.sflag [#allocation3], %s174
          %s176 = sand.u32 %s40, 1
          %s177 = smul.addr %s176, 128
          %s178 = scalar_lea.vmem [#allocation2], %s177
          %s179 = smul.u32 16, %s24
          %s181 = ssub.s32 2048, 2048
          %182 = vsyncadd %s175, %s181
          %s183 = smul.addr %s179, 2
          %s184 = smul.addr %s23, 32
          %s185 = sadd.s32 %s183, %s184
          %s186 = smul.addr %s185, 64
          %s187 = scalar_lea.hbm %s0, %s186
          %s188 = sshll.u32 %s178, 4
          %s189 = int_to_ptr.vmem [resolvable:$true] %s188
          %194 = dma.hbm_to_vmem [thread:$0]  %s187, 2048, %s189, %s175, 128, 128, 8
        $region28: #{tpu_custom_call.1} parent=23 // pred_fallthru
          _
      $region24: #{tpu_custom_call.1} parent=5 // pred_fallthru
        _
      %p195 = scmp.le.s32.totalorder 1, %s16
      %p196 = scmp.lt.s32.totalorder %s16, 3
      %p197 = pnand %p195, %p196
      %p198 = pneg %p197
      // Predicated region
      $region29: #{tpu_custom_call.1} parent=5 // pred_check
        _
      $region30: #{tpu_custom_call.1} parent=5 // pred_check_branch
        %200 = sbr.rel (%p197) target = $region32
      $region31: #{tpu_custom_call.1} parent=5 // pred_region
        %s201 = ssub.s32 %s16, 1
        %s202 = sand.u32 %s43, 1
        %s203 = scalar_lea.sflag [#allocation3], %s202
        %s204 = sand.u32 %s43, 1
        %s205 = smul.addr %s204, 128
        %s206 = scalar_lea.vmem [#allocation2], %s205
        // Predicated region
        $region33: #{tpu_custom_call.1} parent=31 // pred_check
          %p207 = pneg %p56
        $region34: #{tpu_custom_call.1} parent=31 // pred_check_branch
          %209 = sbr.rel (%p207) target = $region36
        $region35: #{tpu_custom_call.1} parent=31 // pred_region
          %210 = dma.done %s203, 2048
        $region36: #{tpu_custom_call.1} parent=31 // pred_fallthru
          _
        // Predicated region
        $region37: #{tpu_custom_call.1} parent=31 // pred_check
          %p211 = pneg %p77
        $region38: #{tpu_custom_call.1} parent=31 // pred_check_branch
          %213 = sbr.rel (%p211) target = $region40
        $region39: #{tpu_custom_call.1} parent=31 // pred_region
          %214 = dma.done [#allocation6], 8192
        $region40: #{tpu_custom_call.1} parent=31 // pred_fallthru
          _
        // Predicated region
        $region41: #{tpu_custom_call.1} parent=31 // pred_check
          %p215 = pneg %p98
        $region42: #{tpu_custom_call.1} parent=31 // pred_check_branch
          %217 = sbr.rel (%p215) target = $region44
        $region43: #{tpu_custom_call.1} parent=31 // pred_region
          %218 = dma.done [#allocation6], 2048
        $region44: #{tpu_custom_call.1} parent=31 // pred_fallthru
          _
        %s219 = sand.u32 %s43, 1
        %s220 = scalar_lea.sflag [#allocation3], %s219
        %s221 = sand.u32 %s43, 1
        %s222 = smul.addr %s221, 128
        %s223 = scalar_lea.vmem [#allocation2], %s222
        %p224 = pneg %p56
        %p225 = pneg %p53
        %p226 = pneg %p77
        %p227 = pneg %p74
        %p228 = pneg %p98
        %p229 = pneg %p95
        %p230 = pneg %p126
        %p231 = pneg %p123
        %s232 = sand.u32 %s113, 1
        %s233 = scalar_lea.sflag [#allocation4], %s232
        %s234 = sand.u32 %s113, 1
        %s235 = smul.addr %s234, 128
        %s236 = scalar_lea.vmem [#allocation8], %s235
        %s237 = smul.u32 16, %s26
        %v239 = vld [vmem:[%s206] sm:$0xff]
        %v240 = vld [vmem:[%s206 + $0x8] sm:$0xff]
        %v241 = vld [vmem:[%s206 + $0x10] sm:$0xff]
        %v242 = vld [vmem:[%s206 + $0x18] sm:$0xff]
        %v243 = vld [vmem:[%s206 + $0x20] sm:$0xff]
        %v244 = vld [vmem:[%s206 + $0x28] sm:$0xff]
        %v245 = vld [vmem:[%s206 + $0x30] sm:$0xff]
        %v246 = vld [vmem:[%s206 + $0x38] sm:$0xff]
        %v247 = vld [vmem:[%s206 + $0x40] sm:$0xff]
        %v248 = vld [vmem:[%s206 + $0x48] sm:$0xff]
        %v249 = vld [vmem:[%s206 + $0x50] sm:$0xff]
        %v250 = vld [vmem:[%s206 + $0x58] sm:$0xff]
        %v251 = vld [vmem:[%s206 + $0x60] sm:$0xff]
        %v252 = vld [vmem:[%s206 + $0x68] sm:$0xff]
        %v253 = vld [vmem:[%s206 + $0x70] sm:$0xff]
        %v254 = vld [vmem:[%s206 + $0x78] sm:$0xff]
        %v255 = vld [vmem:[#allocation5] sm:$0xff]
        %v256 = vld [vmem:[#allocation5 + $0x8] sm:$0xff]
        %v257 = vld [vmem:[#allocation5 + $0x10] sm:$0xff]
        %v258 = vld [vmem:[#allocation5 + $0x18] sm:$0xff]
        %v259 = vld [vmem:[#allocation5 + $0x20] sm:$0xff]
        %v260 = vld [vmem:[#allocation5 + $0x28] sm:$0xff]
        %v261 = vld [vmem:[#allocation5 + $0x30] sm:$0xff]
        %v262 = vld [vmem:[#allocation5 + $0x38] sm:$0xff]
        %v263 = vld [vmem:[#allocation5 + $0x40] sm:$0xff]
        %v264 = vld [vmem:[#allocation5 + $0x48] sm:$0xff]
        %v265 = vld [vmem:[#allocation5 + $0x50] sm:$0xff]
        %v266 = vld [vmem:[#allocation5 + $0x58] sm:$0xff]
        %v267 = vld [vmem:[#allocation5 + $0x60] sm:$0xff]
        %v268 = vld [vmem:[#allocation5 + $0x68] sm:$0xff]
        %v269 = vld [vmem:[#allocation5 + $0x70] sm:$0xff]
        %v270 = vld [vmem:[#allocation5 + $0x78] sm:$0xff]
        %v271 = vld [vmem:[#allocation5 + $0x80] sm:$0xff]
        %v272 = vld [vmem:[#allocation5 + $0x88] sm:$0xff]
        %v273 = vld [vmem:[#allocation5 + $0x90] sm:$0xff]
        %v274 = vld [vmem:[#allocation5 + $0x98] sm:$0xff]
        %v275 = vld [vmem:[#allocation5 + $0xa0] sm:$0xff]
        %v276 = vld [vmem:[#allocation5 + $0xa8] sm:$0xff]
        %v277 = vld [vmem:[#allocation5 + $0xb0] sm:$0xff]
        %v278 = vld [vmem:[#allocation5 + $0xb8] sm:$0xff]
        %v279 = vld [vmem:[#allocation5 + $0xc0] sm:$0xff]
        %v280 = vld [vmem:[#allocation5 + $0xc8] sm:$0xff]
        %v281 = vld [vmem:[#allocation5 + $0xd0] sm:$0xff]
        %v282 = vld [vmem:[#allocation5 + $0xd8] sm:$0xff]
        %v283 = vld [vmem:[#allocation5 + $0xe0] sm:$0xff]
        %v284 = vld [vmem:[#allocation5 + $0xe8] sm:$0xff]
        %v285 = vld [vmem:[#allocation5 + $0xf0] sm:$0xff]
        %v286 = vld [vmem:[#allocation5 + $0xf8] sm:$0xff]
        %v287 = vld [vmem:[#allocation5 + $0x100] sm:$0xff]
        %v288 = vld [vmem:[#allocation5 + $0x108] sm:$0xff]
        %v289 = vld [vmem:[#allocation5 + $0x110] sm:$0xff]
        %v290 = vld [vmem:[#allocation5 + $0x118] sm:$0xff]
        %v291 = vld [vmem:[#allocation5 + $0x120] sm:$0xff]
        %v292 = vld [vmem:[#allocation5 + $0x128] sm:$0xff]
        %v293 = vld [vmem:[#allocation5 + $0x130] sm:$0xff]
        %v294 = vld [vmem:[#allocation5 + $0x138] sm:$0xff]
        %v295 = vld [vmem:[#allocation5 + $0x140] sm:$0xff]
        %v296 = vld [vmem:[#allocation5 + $0x148] sm:$0xff]
        %v297 = vld [vmem:[#allocation5 + $0x150] sm:$0xff]
        %v298 = vld [vmem:[#allocation5 + $0x158] sm:$0xff]
        %v299 = vld [vmem:[#allocation5 + $0x160] sm:$0xff]
        %v300 = vld [vmem:[#allocation5 + $0x168] sm:$0xff]
        %v301 = vld [vmem:[#allocation5 + $0x170] sm:$0xff]
        %v302 = vld [vmem:[#allocation5 + $0x178] sm:$0xff]
        %v303 = vld [vmem:[#allocation5 + $0x180] sm:$0xff]
        %v304 = vld [vmem:[#allocation5 + $0x188] sm:$0xff]
        %v305 = vld [vmem:[#allocation5 + $0x190] sm:$0xff]
        %v306 = vld [vmem:[#allocation5 + $0x198] sm:$0xff]
        %v307 = vld [vmem:[#allocation5 + $0x1a0] sm:$0xff]
        %v308 = vld [vmem:[#allocation5 + $0x1a8] sm:$0xff]
        %v309 = vld [vmem:[#allocation5 + $0x1b0] sm:$0xff]
        %v310 = vld [vmem:[#allocation5 + $0x1b8] sm:$0xff]
        %v311 = vld [vmem:[#allocation5 + $0x1c0] sm:$0xff]
        %v312 = vld [vmem:[#allocation5 + $0x1c8] sm:$0xff]
        %v313 = vld [vmem:[#allocation5 + $0x1d0] sm:$0xff]
        %v314 = vld [vmem:[#allocation5 + $0x1d8] sm:$0xff]
        %v315 = vld [vmem:[#allocation5 + $0x1e0] sm:$0xff]
        %v316 = vld [vmem:[#allocation5 + $0x1e8] sm:$0xff]
        %v317 = vld [vmem:[#allocation5 + $0x1f0] sm:$0xff]
        %v318 = vld [vmem:[#allocation5 + $0x1f8] sm:$0xff]
        %v335 = vunpack.c.l.b16 %v239
        %v336 = vunpack.c.h.b16 %v239
        %v337 = vunpack.c.l.b16 %v240
        %v338 = vunpack.c.h.b16 %v240
        %v339 = vunpack.c.l.b16 %v241
        %v340 = vunpack.c.h.b16 %v241
        %v341 = vunpack.c.l.b16 %v242
        %v342 = vunpack.c.h.b16 %v242
        %v343 = vunpack.c.l.b16 %v243
        %v344 = vunpack.c.h.b16 %v243
        %v345 = vunpack.c.l.b16 %v244
        %v346 = vunpack.c.h.b16 %v244
        %v347 = vunpack.c.l.b16 %v245
        %v348 = vunpack.c.h.b16 %v245
        %v349 = vunpack.c.l.b16 %v246
        %v350 = vunpack.c.h.b16 %v246
        %v351 = vunpack.c.l.b16 %v247
        %v352 = vunpack.c.h.b16 %v247
        %v353 = vunpack.c.l.b16 %v248
        %v354 = vunpack.c.h.b16 %v248
        %v355 = vunpack.c.l.b16 %v249
        %v356 = vunpack.c.h.b16 %v249
        %v357 = vunpack.c.l.b16 %v250
        %v358 = vunpack.c.h.b16 %v250
        %v359 = vunpack.c.l.b16 %v251
        %v360 = vunpack.c.h.b16 %v251
        %v361 = vunpack.c.l.b16 %v252
        %v362 = vunpack.c.h.b16 %v252
        %v363 = vunpack.c.l.b16 %v253
        %v364 = vunpack.c.h.b16 %v253
        %v365 = vunpack.c.l.b16 %v254
        %v366 = vunpack.c.h.b16 %v254
        %v367 = vpack.c.b16 %v337, %v335
        %v368 = vpack.c.b16 %v338, %v336
        %v369 = vpack.c.b16 %v341, %v339
        %v370 = vpack.c.b16 %v342, %v340
        %v371 = vpack.c.b16 %v345, %v343
        %v372 = vpack.c.b16 %v346, %v344
        %v373 = vpack.c.b16 %v349, %v347
        %v374 = vpack.c.b16 %v350, %v348
        %v375 = vpack.c.b16 %v353, %v351
        %v376 = vpack.c.b16 %v354, %v352
        %v377 = vpack.c.b16 %v357, %v355
        %v378 = vpack.c.b16 %v358, %v356
        %v379 = vpack.c.b16 %v361, %v359
        %v380 = vpack.c.b16 %v362, %v360
        %v381 = vpack.c.b16 %v365, %v363
        %v382 = vpack.c.b16 %v366, %v364
        %v463 = vunpack.c.l.b16 %v255
        %v464 = vunpack.c.h.b16 %v255
        %v465 = vunpack.c.l.b16 %v256
        %v466 = vunpack.c.h.b16 %v256
        %v467 = vunpack.c.l.b16 %v257
        %v468 = vunpack.c.h.b16 %v257
        %v469 = vunpack.c.l.b16 %v258
        %v470 = vunpack.c.h.b16 %v258
        %v471 = vunpack.c.l.b16 %v259
        %v472 = vunpack.c.h.b16 %v259
        %v473 = vunpack.c.l.b16 %v260
        %v474 = vunpack.c.h.b16 %v260
        %v475 = vunpack.c.l.b16 %v261
        %v476 = vunpack.c.h.b16 %v261
        %v477 = vunpack.c.l.b16 %v262
        %v478 = vunpack.c.h.b16 %v262
        %v479 = vunpack.c.l.b16 %v263
        %v480 = vunpack.c.h.b16 %v263
        %v481 = vunpack.c.l.b16 %v264
        %v482 = vunpack.c.h.b16 %v264
        %v483 = vunpack.c.l.b16 %v265
        %v484 = vunpack.c.h.b16 %v265
        %v485 = vunpack.c.l.b16 %v266
        %v486 = vunpack.c.h.b16 %v266
        %v487 = vunpack.c.l.b16 %v267
        %v488 = vunpack.c.h.b16 %v267
        %v489 = vunpack.c.l.b16 %v268
        %v490 = vunpack.c.h.b16 %v268
        %v491 = vunpack.c.l.b16 %v269
        %v492 = vunpack.c.h.b16 %v269
        %v493 = vunpack.c.l.b16 %v270
        %v494 = vunpack.c.h.b16 %v270
        %v495 = vunpack.c.l.b16 %v271
        %v496 = vunpack.c.h.b16 %v271
        %v497 = vunpack.c.l.b16 %v272
        %v498 = vunpack.c.h.b16 %v272
        %v499 = vunpack.c.l.b16 %v273
        %v500 = vunpack.c.h.b16 %v273
        %v501 = vunpack.c.l.b16 %v274
        %v502 = vunpack.c.h.b16 %v274
        %v503 = vunpack.c.l.b16 %v275
        %v504 = vunpack.c.h.b16 %v275
        %v505 = vunpack.c.l.b16 %v276
        %v506 = vunpack.c.h.b16 %v276
        %v507 = vunpack.c.l.b16 %v277
        %v508 = vunpack.c.h.b16 %v277
        %v509 = vunpack.c.l.b16 %v278
        %v510 = vunpack.c.h.b16 %v278
        %v511 = vunpack.c.l.b16 %v279
        %v512 = vunpack.c.h.b16 %v279
        %v513 = vunpack.c.l.b16 %v280
        %v514 = vunpack.c.h.b16 %v280
        %v515 = vunpack.c.l.b16 %v281
        %v516 = vunpack.c.h.b16 %v281
        %v517 = vunpack.c.l.b16 %v282
        %v518 = vunpack.c.h.b16 %v282
        %v519 = vunpack.c.l.b16 %v283
        %v520 = vunpack.c.h.b16 %v283
        %v521 = vunpack.c.l.b16 %v284
        %v522 = vunpack.c.h.b16 %v284
        %v523 = vunpack.c.l.b16 %v285
        %v524 = vunpack.c.h.b16 %v285
        %v525 = vunpack.c.l.b16 %v286
        %v526 = vunpack.c.h.b16 %v286
        %v527 = vunpack.c.l.b16 %v287
        %v528 = vunpack.c.h.b16 %v287
        %v529 = vunpack.c.l.b16 %v288
        %v530 = vunpack.c.h.b16 %v288
        %v531 = vunpack.c.l.b16 %v289
        %v532 = vunpack.c.h.b16 %v289
        %v533 = vunpack.c.l.b16 %v290
        %v534 = vunpack.c.h.b16 %v290
        %v535 = vunpack.c.l.b16 %v291
        %v536 = vunpack.c.h.b16 %v291
        %v537 = vunpack.c.l.b16 %v292
        %v538 = vunpack.c.h.b16 %v292
        %v539 = vunpack.c.l.b16 %v293
        %v540 = vunpack.c.h.b16 %v293
        %v541 = vunpack.c.l.b16 %v294
        %v542 = vunpack.c.h.b16 %v294
        %v543 = vunpack.c.l.b16 %v295
        %v544 = vunpack.c.h.b16 %v295
        %v545 = vunpack.c.l.b16 %v296
        %v546 = vunpack.c.h.b16 %v296
        %v547 = vunpack.c.l.b16 %v297
        %v548 = vunpack.c.h.b16 %v297
        %v549 = vunpack.c.l.b16 %v298
        %v550 = vunpack.c.h.b16 %v298
        %v551 = vunpack.c.l.b16 %v299
        %v552 = vunpack.c.h.b16 %v299
        %v553 = vunpack.c.l.b16 %v300
        %v554 = vunpack.c.h.b16 %v300
        %v555 = vunpack.c.l.b16 %v301
        %v556 = vunpack.c.h.b16 %v301
        %v557 = vunpack.c.l.b16 %v302
        %v558 = vunpack.c.h.b16 %v302
        %v559 = vunpack.c.l.b16 %v303
        %v560 = vunpack.c.h.b16 %v303
        %v561 = vunpack.c.l.b16 %v304
        %v562 = vunpack.c.h.b16 %v304
        %v563 = vunpack.c.l.b16 %v305
        %v564 = vunpack.c.h.b16 %v305
        %v565 = vunpack.c.l.b16 %v306
        %v566 = vunpack.c.h.b16 %v306
        %v567 = vunpack.c.l.b16 %v307
        %v568 = vunpack.c.h.b16 %v307
        %v569 = vunpack.c.l.b16 %v308
        %v570 = vunpack.c.h.b16 %v308
        %v571 = vunpack.c.l.b16 %v309
        %v572 = vunpack.c.h.b16 %v309
        %v573 = vunpack.c.l.b16 %v310
        %v574 = vunpack.c.h.b16 %v310
        %v575 = vunpack.c.l.b16 %v311
        %v576 = vunpack.c.h.b16 %v311
        %v577 = vunpack.c.l.b16 %v312
        %v578 = vunpack.c.h.b16 %v312
        %v579 = vunpack.c.l.b16 %v313
        %v580 = vunpack.c.h.b16 %v313
        %v581 = vunpack.c.l.b16 %v314
        %v582 = vunpack.c.h.b16 %v314
        %v583 = vunpack.c.l.b16 %v315
        %v584 = vunpack.c.h.b16 %v315
        %v585 = vunpack.c.l.b16 %v316
        %v586 = vunpack.c.h.b16 %v316
        %v587 = vunpack.c.l.b16 %v317
        %v588 = vunpack.c.h.b16 %v317
        %v589 = vunpack.c.l.b16 %v318
        %v590 = vunpack.c.h.b16 %v318
        %v591 = vpack.c.b16 %v467, %v463
        %v592 = vpack.c.b16 %v468, %v464
        %v593 = vpack.c.b16 %v469, %v465
        %v594 = vpack.c.b16 %v470, %v466
        %v595 = vpack.c.b16 %v475, %v471
        %v596 = vpack.c.b16 %v476, %v472
        %v597 = vpack.c.b16 %v477, %v473
        %v598 = vpack.c.b16 %v478, %v474
        %v599 = vpack.c.b16 %v483, %v479
        %v600 = vpack.c.b16 %v484, %v480
        %v601 = vpack.c.b16 %v485, %v481
        %v602 = vpack.c.b16 %v486, %v482
        %v603 = vpack.c.b16 %v491, %v487
        %v604 = vpack.c.b16 %v492, %v488
        %v605 = vpack.c.b16 %v493, %v489
        %v606 = vpack.c.b16 %v494, %v490
        %v607 = vpack.c.b16 %v499, %v495
        %v608 = vpack.c.b16 %v500, %v496
        %v609 = vpack.c.b16 %v501, %v497
        %v610 = vpack.c.b16 %v502, %v498
        %v611 = vpack.c.b16 %v507, %v503
        %v612 = vpack.c.b16 %v508, %v504
        %v613 = vpack.c.b16 %v509, %v505
        %v614 = vpack.c.b16 %v510, %v506
        %v615 = vpack.c.b16 %v515, %v511
        %v616 = vpack.c.b16 %v516, %v512
        %v617 = vpack.c.b16 %v517, %v513
        %v618 = vpack.c.b16 %v518, %v514
        %v619 = vpack.c.b16 %v523, %v519
        %v620 = vpack.c.b16 %v524, %v520
        %v621 = vpack.c.b16 %v525, %v521
        %v622 = vpack.c.b16 %v526, %v522
        %v623 = vpack.c.b16 %v531, %v527
        %v624 = vpack.c.b16 %v532, %v528
        %v625 = vpack.c.b16 %v533, %v529
        %v626 = vpack.c.b16 %v534, %v530
        %v627 = vpack.c.b16 %v539, %v535
        %v628 = vpack.c.b16 %v540, %v536
        %v629 = vpack.c.b16 %v541, %v537
        %v630 = vpack.c.b16 %v542, %v538
        %v631 = vpack.c.b16 %v547, %v543
        %v632 = vpack.c.b16 %v548, %v544
        %v633 = vpack.c.b16 %v549, %v545
        %v634 = vpack.c.b16 %v550, %v546
        %v635 = vpack.c.b16 %v555, %v551
        %v636 = vpack.c.b16 %v556, %v552
        %v637 = vpack.c.b16 %v557, %v553
        %v638 = vpack.c.b16 %v558, %v554
        %v639 = vpack.c.b16 %v563, %v559
        %v640 = vpack.c.b16 %v564, %v560
        %v641 = vpack.c.b16 %v565, %v561
        %v642 = vpack.c.b16 %v566, %v562
        %v643 = vpack.c.b16 %v571, %v567
        %v644 = vpack.c.b16 %v572, %v568
        %v645 = vpack.c.b16 %v573, %v569
        %v646 = vpack.c.b16 %v574, %v570
        %v647 = vpack.c.b16 %v579, %v575
        %v648 = vpack.c.b16 %v580, %v576
        %v649 = vpack.c.b16 %v581, %v577
        %v650 = vpack.c.b16 %v582, %v578
        %v651 = vpack.c.b16 %v587, %v583
        %v652 = vpack.c.b16 %v588, %v584
        %v653 = vpack.c.b16 %v589, %v585
        %v654 = vpack.c.b16 %v590, %v586
        %719 = vmatprep.subr.bf16.mxu0 %v620
        %720 = vmatpush1.bf16.msra.mxu0 %v619
        %721 = vmatprep.subr.bf16.mxu0 %v616
        %722 = vmatpush1.bf16.msra.mxu0 %v615
        %723 = vmatprep.subr.bf16.mxu0 %v612
        %724 = vmatpush1.bf16.msra.mxu0 %v611
        %725 = vmatprep.subr.bf16.mxu0 %v608
        %726 = vmatpush1.bf16.msra.mxu0 %v607
        %727 = vmatprep.subr.bf16.mxu0 %v604
        %728 = vmatpush1.bf16.msra.mxu0 %v603
        %729 = vmatprep.subr.bf16.mxu0 %v600
        %730 = vmatpush1.bf16.msra.mxu0 %v599
        %731 = vmatprep.subr.bf16.mxu0 %v596
        %732 = vmatpush1.bf16.msra.mxu0 %v595
        %733 = vmatprep.subr.bf16.mxu0 %v592
        %734 = vmatpush1.bf16.msra.mxu0 %v591
        %735 = vmatprep.subr.bf16.mxu0 %v652
        %736 = vmatpush2.bf16.msra.mxu0 %v651
        %737 = vmatprep.subr.bf16.mxu0 %v648
        %738 = vmatpush2.bf16.msra.mxu0 %v647
        %739 = vmatprep.subr.bf16.mxu0 %v644
        %740 = vmatpush2.bf16.msra.mxu0 %v643
        %741 = vmatprep.subr.bf16.mxu0 %v640
        %742 = vmatpush2.bf16.msra.mxu0 %v639
        %743 = vmatprep.subr.bf16.mxu0 %v636
        %744 = vmatpush2.bf16.msra.mxu0 %v635
        %745 = vmatprep.subr.bf16.mxu0 %v632
        %746 = vmatpush2.bf16.msra.mxu0 %v631
        %747 = vmatprep.subr.bf16.mxu0 %v628
        %748 = vmatpush2.bf16.msra.mxu0 %v627
        %749 = vmatprep.subr.bf16.mxu0 %v624
        %750 = vmatpush2.bf16.msra.mxu0 %v623
        %751 = vmatprep.mubr.bf16.mxu0 %v368
        %752 = vmatmul.mubr.bf16.gmra.mxu0 %v367
        %v753 = vpop.f32.mrf.mxu0
        %v754 = vadd.f32 0.0, %v753
        %v755 = vpop.f32.mrf.mxu0
        %v756 = vadd.f32 0.0, %v755
        %v757 = vpop.f32.mrf.mxu0
        %v758 = vadd.f32 0.0, %v757
        %v759 = vpop.f32.mrf.mxu0
        %v760 = vadd.f32 0.0, %v759
        %761 = vmatprep.mubr.bf16.mxu0 %v370
        %762 = vmatmul.mubr.bf16.gmra.mxu0 %v369
        %v763 = vpop.f32.mrf.mxu0
        %v764 = vadd.f32 0.0, %v763
        %v765 = vpop.f32.mrf.mxu0
        %v766 = vadd.f32 0.0, %v765
        %v767 = vpop.f32.mrf.mxu0
        %v768 = vadd.f32 0.0, %v767
        %v769 = vpop.f32.mrf.mxu0
        %v770 = vadd.f32 0.0, %v769
        %771 = vmatprep.mubr.bf16.mxu0 %v372
        %772 = vmatmul.mubr.bf16.gmra.mxu0 %v371
        %v773 = vpop.f32.mrf.mxu0
        %v774 = vadd.f32 0.0, %v773
        %v775 = vpop.f32.mrf.mxu0
        %v776 = vadd.f32 0.0, %v775
        %v777 = vpop.f32.mrf.mxu0
        %v778 = vadd.f32 0.0, %v777
        %v779 = vpop.f32.mrf.mxu0
        %v780 = vadd.f32 0.0, %v779
        %781 = vmatprep.mubr.bf16.mxu0 %v374
        %782 = vmatmul.mubr.bf16.gmra.mxu0 %v373
        %v783 = vpop.f32.mrf.mxu0
        %v784 = vadd.f32 0.0, %v783
        %v785 = vpop.f32.mrf.mxu0
        %v786 = vadd.f32 0.0, %v785
        %v787 = vpop.f32.mrf.mxu0
        %v788 = vadd.f32 0.0, %v787
        %v789 = vpop.f32.mrf.mxu0
        %v790 = vadd.f32 0.0, %v789
        %791 = vmatprep.mubr.bf16.mxu0 %v376
        %792 = vmatmul.mubr.bf16.gmra.mxu0 %v375
        %v793 = vpop.f32.mrf.mxu0
        %v794 = vadd.f32 0.0, %v793
        %v795 = vpop.f32.mrf.mxu0
        %v796 = vadd.f32 0.0, %v795
        %v797 = vpop.f32.mrf.mxu0
        %v798 = vadd.f32 0.0, %v797
        %v799 = vpop.f32.mrf.mxu0
        %v800 = vadd.f32 0.0, %v799
        %801 = vmatprep.mubr.bf16.mxu0 %v378
        %802 = vmatmul.mubr.bf16.gmra.mxu0 %v377
        %v803 = vpop.f32.mrf.mxu0
        %v804 = vadd.f32 0.0, %v803
        %v805 = vpop.f32.mrf.mxu0
        %v806 = vadd.f32 0.0, %v805
        %v807 = vpop.f32.mrf.mxu0
        %v808 = vadd.f32 0.0, %v807
        %v809 = vpop.f32.mrf.mxu0
        %v810 = vadd.f32 0.0, %v809
        %811 = vmatprep.mubr.bf16.mxu0 %v380
        %812 = vmatmul.mubr.bf16.gmra.mxu0 %v379
        %v813 = vpop.f32.mrf.mxu0
        %v814 = vadd.f32 0.0, %v813
        %v815 = vpop.f32.mrf.mxu0
        %v816 = vadd.f32 0.0, %v815
        %v817 = vpop.f32.mrf.mxu0
        %v818 = vadd.f32 0.0, %v817
        %v819 = vpop.f32.mrf.mxu0
        %v820 = vadd.f32 0.0, %v819
        %821 = vmatprep.mubr.bf16.mxu0 %v382
        %822 = vmatmul.mubr.bf16.gmra.mxu0 %v381
        %v823 = vpop.f32.mrf.mxu0
        %v824 = vadd.f32 0.0, %v823
        %v825 = vpop.f32.mrf.mxu0
        %v826 = vadd.f32 0.0, %v825
        %v827 = vpop.f32.mrf.mxu0
        %v828 = vadd.f32 0.0, %v827
        %v829 = vpop.f32.mrf.mxu0
        %v830 = vadd.f32 0.0, %v829
        %831 = vdwg.mxu0
        %832 = vmatprep.subr.bf16.mxu0 %v622
        %833 = vmatpush1.bf16.msra.mxu0 %v621
        %834 = vmatprep.subr.bf16.mxu0 %v618
        %835 = vmatpush1.bf16.msra.mxu0 %v617
        %836 = vmatprep.subr.bf16.mxu0 %v614
        %837 = vmatpush1.bf16.msra.mxu0 %v613
        %838 = vmatprep.subr.bf16.mxu0 %v610
        %839 = vmatpush1.bf16.msra.mxu0 %v609
        %840 = vmatprep.subr.bf16.mxu0 %v606
        %841 = vmatpush1.bf16.msra.mxu0 %v605
        %842 = vmatprep.subr.bf16.mxu0 %v602
        %843 = vmatpush1.bf16.msra.mxu0 %v601
        %844 = vmatprep.subr.bf16.mxu0 %v598
        %845 = vmatpush1.bf16.msra.mxu0 %v597
        %846 = vmatprep.subr.bf16.mxu0 %v594
        %847 = vmatpush1.bf16.msra.mxu0 %v593
        %848 = vmatprep.subr.bf16.mxu0 %v654
        %849 = vmatpush2.bf16.msra.mxu0 %v653
        %850 = vmatprep.subr.bf16.mxu0 %v650
        %851 = vmatpush2.bf16.msra.mxu0 %v649
        %852 = vmatprep.subr.bf16.mxu0 %v646
        %853 = vmatpush2.bf16.msra.mxu0 %v645
        %854 = vmatprep.subr.bf16.mxu0 %v642
        %855 = vmatpush2.bf16.msra.mxu0 %v641
        %856 = vmatprep.subr.bf16.mxu0 %v638
        %857 = vmatpush2.bf16.msra.mxu0 %v637
        %858 = vmatprep.subr.bf16.mxu0 %v634
        %859 = vmatpush2.bf16.msra.mxu0 %v633
        %860 = vmatprep.subr.bf16.mxu0 %v630
        %861 = vmatpush2.bf16.msra.mxu0 %v629
        %862 = vmatprep.subr.bf16.mxu0 %v626
        %863 = vmatpush2.bf16.msra.mxu0 %v625
        %864 = vmatprep.mubr.bf16.mxu0 %v368
        %865 = vmatmul.mubr.bf16.gmra.mxu0 %v367
        %v866 = vpop.f32.mrf.mxu0
        %v867 = vadd.f32 0.0, %v866
        %v868 = vpop.f32.mrf.mxu0
        %v869 = vadd.f32 0.0, %v868
        %v870 = vpop.f32.mrf.mxu0
        %v871 = vadd.f32 0.0, %v870
        %v872 = vpop.f32.mrf.mxu0
        %v873 = vadd.f32 0.0, %v872
        %874 = vmatprep.mubr.bf16.mxu0 %v370
        %875 = vmatmul.mubr.bf16.gmra.mxu0 %v369
        %v876 = vpop.f32.mrf.mxu0
        %v877 = vadd.f32 0.0, %v876
        %v878 = vpop.f32.mrf.mxu0
        %v879 = vadd.f32 0.0, %v878
        %v880 = vpop.f32.mrf.mxu0
        %v881 = vadd.f32 0.0, %v880
        %v882 = vpop.f32.mrf.mxu0
        %v883 = vadd.f32 0.0, %v882
        %884 = vmatprep.mubr.bf16.mxu0 %v372
        %885 = vmatmul.mubr.bf16.gmra.mxu0 %v371
        %v886 = vpop.f32.mrf.mxu0
        %v887 = vadd.f32 0.0, %v886
        %v888 = vpop.f32.mrf.mxu0
        %v889 = vadd.f32 0.0, %v888
        %v890 = vpop.f32.mrf.mxu0
        %v891 = vadd.f32 0.0, %v890
        %v892 = vpop.f32.mrf.mxu0
        %v893 = vadd.f32 0.0, %v892
        %894 = vmatprep.mubr.bf16.mxu0 %v374
        %895 = vmatmul.mubr.bf16.gmra.mxu0 %v373
        %v896 = vpop.f32.mrf.mxu0
        %v897 = vadd.f32 0.0, %v896
        %v898 = vpop.f32.mrf.mxu0
        %v899 = vadd.f32 0.0, %v898
        %v900 = vpop.f32.mrf.mxu0
        %v901 = vadd.f32 0.0, %v900
        %v902 = vpop.f32.mrf.mxu0
        %v903 = vadd.f32 0.0, %v902
        %904 = vmatprep.mubr.bf16.mxu0 %v376
        %905 = vmatmul.mubr.bf16.gmra.mxu0 %v375
        %v906 = vpop.f32.mrf.mxu0
        %v907 = vadd.f32 0.0, %v906
        %v908 = vpop.f32.mrf.mxu0
        %v909 = vadd.f32 0.0, %v908
        %v910 = vpop.f32.mrf.mxu0
        %v911 = vadd.f32 0.0, %v910
        %v912 = vpop.f32.mrf.mxu0
        %v913 = vadd.f32 0.0, %v912
        %914 = vmatprep.mubr.bf16.mxu0 %v378
        %915 = vmatmul.mubr.bf16.gmra.mxu0 %v377
        %v916 = vpop.f32.mrf.mxu0
        %v917 = vadd.f32 0.0, %v916
        %v918 = vpop.f32.mrf.mxu0
        %v919 = vadd.f32 0.0, %v918
        %v920 = vpop.f32.mrf.mxu0
        %v921 = vadd.f32 0.0, %v920
        %v922 = vpop.f32.mrf.mxu0
        %v923 = vadd.f32 0.0, %v922
        %924 = vmatprep.mubr.bf16.mxu0 %v380
        %925 = vmatmul.mubr.bf16.gmra.mxu0 %v379
        %v926 = vpop.f32.mrf.mxu0
        %v927 = vadd.f32 0.0, %v926
        %v928 = vpop.f32.mrf.mxu0
        %v929 = vadd.f32 0.0, %v928
        %v930 = vpop.f32.mrf.mxu0
        %v931 = vadd.f32 0.0, %v930
        %v932 = vpop.f32.mrf.mxu0
        %v933 = vadd.f32 0.0, %v932
        %934 = vmatprep.mubr.bf16.mxu0 %v382
        %935 = vmatmul.mubr.bf16.gmra.mxu0 %v381
        %v936 = vpop.f32.mrf.mxu0
        %v937 = vadd.f32 0.0, %v936
        %v938 = vpop.f32.mrf.mxu0
        %v939 = vadd.f32 0.0, %v938
        %v940 = vpop.f32.mrf.mxu0
        %v941 = vadd.f32 0.0, %v940
        %v942 = vpop.f32.mrf.mxu0
        %v943 = vadd.f32 0.0, %v942
        %944 = vdwg.mxu0
        %v945 = vmul.f32 %v754, %v754
        %v946 = vmul.f32 %v756, %v756
        %v947 = vmul.f32 %v758, %v758
        %v948 = vmul.f32 %v760, %v760
        %v949 = vmul.f32 %v764, %v764
        %v950 = vmul.f32 %v766, %v766
        %v951 = vmul.f32 %v768, %v768
        %v952 = vmul.f32 %v770, %v770
        %v953 = vmul.f32 %v774, %v774
        %v954 = vmul.f32 %v776, %v776
        %v955 = vmul.f32 %v778, %v778
        %v956 = vmul.f32 %v780, %v780
        %v957 = vmul.f32 %v784, %v784
        %v958 = vmul.f32 %v786, %v786
        %v959 = vmul.f32 %v788, %v788
        %v960 = vmul.f32 %v790, %v790
        %v961 = vmul.f32 %v794, %v794
        %v962 = vmul.f32 %v796, %v796
        %v963 = vmul.f32 %v798, %v798
        %v964 = vmul.f32 %v800, %v800
        %v965 = vmul.f32 %v804, %v804
        %v966 = vmul.f32 %v806, %v806
        %v967 = vmul.f32 %v808, %v808
        %v968 = vmul.f32 %v810, %v810
        %v969 = vmul.f32 %v814, %v814
        %v970 = vmul.f32 %v816, %v816
        %v971 = vmul.f32 %v818, %v818
        %v972 = vmul.f32 %v820, %v820
        %v973 = vmul.f32 %v824, %v824
        %v974 = vmul.f32 %v826, %v826
        %v975 = vmul.f32 %v828, %v828
        %v976 = vmul.f32 %v830, %v830
        %v977 = vmul.f32 %v867, %v867
        %v978 = vmul.f32 %v869, %v869
        %v979 = vmul.f32 %v871, %v871
        %v980 = vmul.f32 %v873, %v873
        %v981 = vmul.f32 %v877, %v877
        %v982 = vmul.f32 %v879, %v879
        %v983 = vmul.f32 %v881, %v881
        %v984 = vmul.f32 %v883, %v883
        %v985 = vmul.f32 %v887, %v887
        %v986 = vmul.f32 %v889, %v889
        %v987 = vmul.f32 %v891, %v891
        %v988 = vmul.f32 %v893, %v893
        %v989 = vmul.f32 %v897, %v897
        %v990 = vmul.f32 %v899, %v899
        %v991 = vmul.f32 %v901, %v901
        %v992 = vmul.f32 %v903, %v903
        %v993 = vmul.f32 %v907, %v907
        %v994 = vmul.f32 %v909, %v909
        %v995 = vmul.f32 %v911, %v911
        %v996 = vmul.f32 %v913, %v913
        %v997 = vmul.f32 %v917, %v917
        %v998 = vmul.f32 %v919, %v919
        %v999 = vmul.f32 %v921, %v921
        %v1000 = vmul.f32 %v923, %v923
        %v1001 = vmul.f32 %v927, %v927
        %v1002 = vmul.f32 %v929, %v929
        %v1003 = vmul.f32 %v931, %v931
        %v1004 = vmul.f32 %v933, %v933
        %v1005 = vmul.f32 %v937, %v937
        %v1006 = vmul.f32 %v939, %v939
        %v1007 = vmul.f32 %v941, %v941
        %v1008 = vmul.f32 %v943, %v943
        %v1009 = vadd.f32 %v945, %v977
        %v1010 = vadd.f32 %v946, %v978
        %v1011 = vadd.f32 %v947, %v979
        %v1012 = vadd.f32 %v948, %v980
        %v1013 = vadd.f32 %v949, %v981
        %v1014 = vadd.f32 %v950, %v982
        %v1015 = vadd.f32 %v951, %v983
        %v1016 = vadd.f32 %v952, %v984
        %v1017 = vadd.f32 %v953, %v985
        %v1018 = vadd.f32 %v954, %v986
        %v1019 = vadd.f32 %v955, %v987
        %v1020 = vadd.f32 %v956, %v988
        %v1021 = vadd.f32 %v957, %v989
        %v1022 = vadd.f32 %v958, %v990
        %v1023 = vadd.f32 %v959, %v991
        %v1024 = vadd.f32 %v960, %v992
        %v1025 = vadd.f32 %v961, %v993
        %v1026 = vadd.f32 %v962, %v994
        %v1027 = vadd.f32 %v963, %v995
        %v1028 = vadd.f32 %v964, %v996
        %v1029 = vadd.f32 %v965, %v997
        %v1030 = vadd.f32 %v966, %v998
        %v1031 = vadd.f32 %v967, %v999
        %v1032 = vadd.f32 %v968, %v1000
        %v1033 = vadd.f32 %v969, %v1001
        %v1034 = vadd.f32 %v970, %v1002
        %v1035 = vadd.f32 %v971, %v1003
        %v1036 = vadd.f32 %v972, %v1004
        %v1037 = vadd.f32 %v973, %v1005
        %v1038 = vadd.f32 %v974, %v1006
        %v1039 = vadd.f32 %v975, %v1007
        %v1040 = vadd.f32 %v976, %v1008
        %v1041 = vpack.c.bf16 %v1011, %v1009
        %v1042 = vpack.c.bf16 %v1012, %v1010
        %v1043 = vpack.c.bf16 %v1015, %v1013
        %v1044 = vpack.c.bf16 %v1016, %v1014
        %v1045 = vpack.c.bf16 %v1019, %v1017
        %v1046 = vpack.c.bf16 %v1020, %v1018
        %v1047 = vpack.c.bf16 %v1023, %v1021
        %v1048 = vpack.c.bf16 %v1024, %v1022
        %v1049 = vpack.c.bf16 %v1027, %v1025
        %v1050 = vpack.c.bf16 %v1028, %v1026
        %v1051 = vpack.c.bf16 %v1031, %v1029
        %v1052 = vpack.c.bf16 %v1032, %v1030
        %v1053 = vpack.c.bf16 %v1035, %v1033
        %v1054 = vpack.c.bf16 %v1036, %v1034
        %v1055 = vpack.c.bf16 %v1039, %v1037
        %v1056 = vpack.c.bf16 %v1040, %v1038
        %v1057 = vld [vmem:[#allocation7] sm:$0xf]
        %v1058 = vld [vmem:[#allocation7 + $0x4] sm:$0xf]
        %v1059 = vld [vmem:[#allocation7 + $0x8] sm:$0xf]
        %v1060 = vld [vmem:[#allocation7 + $0xc] sm:$0xf]
        %v1061 = vld [vmem:[#allocation7 + $0x10] sm:$0xf]
        %v1062 = vld [vmem:[#allocation7 + $0x14] sm:$0xf]
        %v1063 = vld [vmem:[#allocation7 + $0x18] sm:$0xf]
        %v1064 = vld [vmem:[#allocation7 + $0x1c] sm:$0xf]
        %v1065 = vld [vmem:[#allocation7 + $0x20] sm:$0xf]
        %v1066 = vld [vmem:[#allocation7 + $0x24] sm:$0xf]
        %v1067 = vld [vmem:[#allocation7 + $0x28] sm:$0xf]
        %v1068 = vld [vmem:[#allocation7 + $0x2c] sm:$0xf]
        %v1069 = vld [vmem:[#allocation7 + $0x30] sm:$0xf]
        %v1070 = vld [vmem:[#allocation7 + $0x34] sm:$0xf]
        %v1071 = vld [vmem:[#allocation7 + $0x38] sm:$0xf]
        %v1072 = vld [vmem:[#allocation7 + $0x3c] sm:$0xf]
        %v1073 = vld [vmem:[#allocation7 + $0x40] sm:$0xf]
        %v1074 = vld [vmem:[#allocation7 + $0x44] sm:$0xf]
        %v1075 = vld [vmem:[#allocation7 + $0x48] sm:$0xf]
        %v1076 = vld [vmem:[#allocation7 + $0x4c] sm:$0xf]
        %v1077 = vld [vmem:[#allocation7 + $0x50] sm:$0xf]
        %v1078 = vld [vmem:[#allocation7 + $0x54] sm:$0xf]
        %v1079 = vld [vmem:[#allocation7 + $0x58] sm:$0xf]
        %v1080 = vld [vmem:[#allocation7 + $0x5c] sm:$0xf]
        %v1081 = vld [vmem:[#allocation7 + $0x60] sm:$0xf]
        %v1082 = vld [vmem:[#allocation7 + $0x64] sm:$0xf]
        %v1083 = vld [vmem:[#allocation7 + $0x68] sm:$0xf]
        %v1084 = vld [vmem:[#allocation7 + $0x6c] sm:$0xf]
        %v1085 = vld [vmem:[#allocation7 + $0x70] sm:$0xf]
        %v1086 = vld [vmem:[#allocation7 + $0x74] sm:$0xf]
        %v1087 = vld [vmem:[#allocation7 + $0x78] sm:$0xf]
        %v1088 = vld [vmem:[#allocation7 + $0x7c] sm:$0xf]
        %v1121 = vunpack.c.l.b16 %v1057
        %v1122 = vunpack.c.l.b16 %v1058
        %v1123 = vunpack.c.l.b16 %v1059
        %v1124 = vunpack.c.l.b16 %v1060
        %v1125 = vunpack.c.l.b16 %v1061
        %v1126 = vunpack.c.l.b16 %v1062
        %v1127 = vunpack.c.l.b16 %v1063
        %v1128 = vunpack.c.l.b16 %v1064
        %v1129 = vunpack.c.l.b16 %v1065
        %v1130 = vunpack.c.l.b16 %v1066
        %v1131 = vunpack.c.l.b16 %v1067
        %v1132 = vunpack.c.l.b16 %v1068
        %v1133 = vunpack.c.l.b16 %v1069
        %v1134 = vunpack.c.l.b16 %v1070
        %v1135 = vunpack.c.l.b16 %v1071
        %v1136 = vunpack.c.l.b16 %v1072
        %v1137 = vunpack.c.l.b16 %v1073
        %v1138 = vunpack.c.l.b16 %v1074
        %v1139 = vunpack.c.l.b16 %v1075
        %v1140 = vunpack.c.l.b16 %v1076
        %v1141 = vunpack.c.l.b16 %v1077
        %v1142 = vunpack.c.l.b16 %v1078
        %v1143 = vunpack.c.l.b16 %v1079
        %v1144 = vunpack.c.l.b16 %v1080
        %v1145 = vunpack.c.l.b16 %v1081
        %v1146 = vunpack.c.l.b16 %v1082
        %v1147 = vunpack.c.l.b16 %v1083
        %v1148 = vunpack.c.l.b16 %v1084
        %v1149 = vunpack.c.l.b16 %v1085
        %v1150 = vunpack.c.l.b16 %v1086
        %v1151 = vunpack.c.l.b16 %v1087
        %v1152 = vunpack.c.l.b16 %v1088
        %v1153 = vpack.c.b16 %v1122, %v1121
        %v1154 = vpack.c.b16 %v1124, %v1123
        %v1155 = vpack.c.b16 %v1126, %v1125
        %v1156 = vpack.c.b16 %v1128, %v1127
        %v1157 = vpack.c.b16 %v1130, %v1129
        %v1158 = vpack.c.b16 %v1132, %v1131
        %v1159 = vpack.c.b16 %v1134, %v1133
        %v1160 = vpack.c.b16 %v1136, %v1135
        %v1161 = vpack.c.b16 %v1138, %v1137
        %v1162 = vpack.c.b16 %v1140, %v1139
        %v1163 = vpack.c.b16 %v1142, %v1141
        %v1164 = vpack.c.b16 %v1144, %v1143
        %v1165 = vpack.c.b16 %v1146, %v1145
        %v1166 = vpack.c.b16 %v1148, %v1147
        %v1167 = vpack.c.b16 %v1150, %v1149
        %v1168 = vpack.c.b16 %v1152, %v1151
        %1185 = vmatprep.subr.bf16.mxu0 0
        %1186 = vmatpush1.bf16.msra.mxu0 %v1160
        %1187 = vmatprep.subr.bf16.mxu0 0
        %1188 = vmatpush1.bf16.msra.mxu0 %v1159
        %1189 = vmatprep.subr.bf16.mxu0 0
        %1190 = vmatpush1.bf16.msra.mxu0 %v1158
        %1191 = vmatprep.subr.bf16.mxu0 0
        %1192 = vmatpush1.bf16.msra.mxu0 %v1157
        %1193 = vmatprep.subr.bf16.mxu0 0
        %1194 = vmatpush1.bf16.msra.mxu0 %v1156
        %1195 = vmatprep.subr.bf16.mxu0 0
        %1196 = vmatpush1.bf16.msra.mxu0 %v1155
        %1197 = vmatprep.subr.bf16.mxu0 0
        %1198 = vmatpush1.bf16.msra.mxu0 %v1154
        %1199 = vmatprep.subr.bf16.mxu0 0
        %1200 = vmatpush1.bf16.msra.mxu0 %v1153
        %1201 = vmatprep.subr.bf16.mxu0 0
        %1202 = vmatpush2.bf16.msra.mxu0 %v1168
        %1203 = vmatprep.subr.bf16.mxu0 0
        %1204 = vmatpush2.bf16.msra.mxu0 %v1167
        %1205 = vmatprep.subr.bf16.mxu0 0
        %1206 = vmatpush2.bf16.msra.mxu0 %v1166
        %1207 = vmatprep.subr.bf16.mxu0 0
        %1208 = vmatpush2.bf16.msra.mxu0 %v1165
        %1209 = vmatprep.subr.bf16.mxu0 0
        %1210 = vmatpush2.bf16.msra.mxu0 %v1164
        %1211 = vmatprep.subr.bf16.mxu0 0
        %1212 = vmatpush2.bf16.msra.mxu0 %v1163
        %1213 = vmatprep.subr.bf16.mxu0 0
        %1214 = vmatpush2.bf16.msra.mxu0 %v1162
        %1215 = vmatprep.subr.bf16.mxu0 0
        %1216 = vmatpush2.bf16.msra.mxu0 %v1161
        %1217 = vmatprep.mubr.bf16.mxu0 %v1042
        %1218 = vmatmul.mubr.bf16.gmra.mxu0 %v1041
        %v1219 = vpop.f32.mrf.mxu0
        %v1220 = vadd.f32 1e-14, %v1219
        %v1221 = vpop.f32.mrf.mxu0
        %v1222 = vpop.f32.mrf.mxu0
        %v1223 = vadd.f32 1e-14, %v1222
        %v1224 = vpop.f32.mrf.mxu0
        %1225 = vmatprep.mubr.bf16.mxu0 %v1044
        %1226 = vmatmul.mubr.bf16.gmra.mxu0 %v1043
        %v1227 = vpop.f32.mrf.mxu0
        %v1228 = vadd.f32 1e-14, %v1227
        %v1229 = vpop.f32.mrf.mxu0
        %v1230 = vpop.f32.mrf.mxu0
        %v1231 = vadd.f32 1e-14, %v1230
        %v1232 = vpop.f32.mrf.mxu0
        %1233 = vmatprep.mubr.bf16.mxu0 %v1046
        %1234 = vmatmul.mubr.bf16.gmra.mxu0 %v1045
        %v1235 = vpop.f32.mrf.mxu0
        %v1236 = vadd.f32 1e-14, %v1235
        %v1237 = vpop.f32.mrf.mxu0
        %v1238 = vpop.f32.mrf.mxu0
        %v1239 = vadd.f32 1e-14, %v1238
        %v1240 = vpop.f32.mrf.mxu0
        %1241 = vmatprep.mubr.bf16.mxu0 %v1048
        %1242 = vmatmul.mubr.bf16.gmra.mxu0 %v1047
        %v1243 = vpop.f32.mrf.mxu0
        %v1244 = vadd.f32 1e-14, %v1243
        %v1245 = vpop.f32.mrf.mxu0
        %v1246 = vpop.f32.mrf.mxu0
        %v1247 = vadd.f32 1e-14, %v1246
        %v1248 = vpop.f32.mrf.mxu0
        %1249 = vmatprep.mubr.bf16.mxu0 %v1050
        %1250 = vmatmul.mubr.bf16.gmra.mxu0 %v1049
        %v1251 = vpop.f32.mrf.mxu0
        %v1252 = vadd.f32 1e-14, %v1251
        %v1253 = vpop.f32.mrf.mxu0
        %v1254 = vpop.f32.mrf.mxu0
        %v1255 = vadd.f32 1e-14, %v1254
        %v1256 = vpop.f32.mrf.mxu0
        %1257 = vmatprep.mubr.bf16.mxu0 %v1052
        %1258 = vmatmul.mubr.bf16.gmra.mxu0 %v1051
        %v1259 = vpop.f32.mrf.mxu0
        %v1260 = vadd.f32 1e-14, %v1259
        %v1261 = vpop.f32.mrf.mxu0
        %v1262 = vpop.f32.mrf.mxu0
        %v1263 = vadd.f32 1e-14, %v1262
        %v1264 = vpop.f32.mrf.mxu0
        %1265 = vmatprep.mubr.bf16.mxu0 %v1054
        %1266 = vmatmul.mubr.bf16.gmra.mxu0 %v1053
        %v1267 = vpop.f32.mrf.mxu0
        %v1268 = vadd.f32 1e-14, %v1267
        %v1269 = vpop.f32.mrf.mxu0
        %v1270 = vpop.f32.mrf.mxu0
        %v1271 = vadd.f32 1e-14, %v1270
        %v1272 = vpop.f32.mrf.mxu0
        %1273 = vmatprep.mubr.bf16.mxu0 %v1056
        %1274 = vmatmul.mubr.bf16.gmra.mxu0 %v1055
        %v1275 = vpop.f32.mrf.mxu0
        %v1276 = vadd.f32 1e-14, %v1275
        %v1277 = vpop.f32.mrf.mxu0
        %v1278 = vpop.f32.mrf.mxu0
        %v1279 = vadd.f32 1e-14, %v1278
        %v1280 = vpop.f32.mrf.mxu0
        %1281 = vdwg.mxu0
        %v1282 = vlog2.pop %v1220
        %v1283 = vmul.f32 %v1282, 0.6931472
        %v1284 = vlog2.pop %v1223
        %v1285 = vmul.f32 %v1284, 0.6931472
        %v1286 = vlog2.pop %v1228
        %v1287 = vmul.f32 %v1286, 0.6931472
        %v1288 = vlog2.pop %v1231
        %v1289 = vmul.f32 %v1288, 0.6931472
        %v1290 = vlog2.pop %v1236
        %v1291 = vmul.f32 %v1290, 0.6931472
        %v1292 = vlog2.pop %v1239
        %v1293 = vmul.f32 %v1292, 0.6931472
        %v1294 = vlog2.pop %v1244
        %v1295 = vmul.f32 %v1294, 0.6931472
        %v1296 = vlog2.pop %v1247
        %v1297 = vmul.f32 %v1296, 0.6931472
        %v1298 = vlog2.pop %v1252
        %v1299 = vmul.f32 %v1298, 0.6931472
        %v1300 = vlog2.pop %v1255
        %v1301 = vmul.f32 %v1300, 0.6931472
        %v1302 = vlog2.pop %v1260
        %v1303 = vmul.f32 %v1302, 0.6931472
        %v1304 = vlog2.pop %v1263
        %v1305 = vmul.f32 %v1304, 0.6931472
        %v1306 = vlog2.pop %v1268
        %v1307 = vmul.f32 %v1306, 0.6931472
        %v1308 = vlog2.pop %v1271
        %v1309 = vmul.f32 %v1308, 0.6931472
        %v1310 = vlog2.pop %v1276
        %v1311 = vmul.f32 %v1310, 0.6931472
        %v1312 = vlog2.pop %v1279
        %v1313 = vmul.f32 %v1312, 0.6931472
        %1314 = vxpose.xlu0.b32.start [1/16] %v1283, 128
        %1315 = vxpose.xlu0.b32.cont [2/16] %v1285, 128
        %1316 = vxpose.xlu0.b32.cont [3/16] %v1287, 128
        %1317 = vxpose.xlu0.b32.cont [4/16] %v1289, 128
        %1318 = vxpose.xlu0.b32.cont [5/16] %v1291, 128
        %1319 = vxpose.xlu0.b32.cont [6/16] %v1293, 128
        %1320 = vxpose.xlu0.b32.cont [7/16] %v1295, 128
        %1321 = vxpose.xlu0.b32.cont [8/16] %v1297, 128
        %1322 = vxpose.xlu0.b32.cont [9/16] %v1299, 128
        %1323 = vxpose.xlu0.b32.cont [10/16] %v1301, 128
        %1324 = vxpose.xlu0.b32.cont [11/16] %v1303, 128
        %1325 = vxpose.xlu0.b32.cont [12/16] %v1305, 128
        %1326 = vxpose.xlu0.b32.cont [13/16] %v1307, 128
        %1327 = vxpose.xlu0.b32.cont [14/16] %v1309, 128
        %1328 = vxpose.xlu0.b32.cont [15/16] %v1311, 128
        %1329 = vxpose.xlu0.b32.end [16/16] %v1313, 128
        %v1330 = vpop.trf.xlu0
        %v1331 = vpop.trf.xlu0
        %v1332 = vpop.trf.xlu0
        %v1333 = vpop.trf.xlu0
        %v1334 = vpop.trf.xlu0
        %v1335 = vpop.trf.xlu0
        %v1336 = vpop.trf.xlu0
        %v1337 = vpop.trf.xlu0
        %v1338 = vpop.trf.xlu0
        %v1339 = vpop.trf.xlu0
        %v1340 = vpop.trf.xlu0
        %v1341 = vpop.trf.xlu0
        %v1342 = vpop.trf.xlu0
        %v1343 = vpop.trf.xlu0
        %v1344 = vpop.trf.xlu0
        %v1345 = vpop.trf.xlu0
        %1346 = vst [vmem:[%s236] sm:$0xff] %v1330
        %1347 = vst [vmem:[%s236 + $0x8] sm:$0xff] %v1331
        %1348 = vst [vmem:[%s236 + $0x10] sm:$0xff] %v1332
        %1349 = vst [vmem:[%s236 + $0x18] sm:$0xff] %v1333
        %1350 = vst [vmem:[%s236 + $0x20] sm:$0xff] %v1334
        %1351 = vst [vmem:[%s236 + $0x28] sm:$0xff] %v1335
        %1352 = vst [vmem:[%s236 + $0x30] sm:$0xff] %v1336
        %1353 = vst [vmem:[%s236 + $0x38] sm:$0xff] %v1337
        %1354 = vst [vmem:[%s236 + $0x40] sm:$0xff] %v1338
        %1355 = vst [vmem:[%s236 + $0x48] sm:$0xff] %v1339
        %1356 = vst [vmem:[%s236 + $0x50] sm:$0xff] %v1340
        %1357 = vst [vmem:[%s236 + $0x58] sm:$0xff] %v1341
        %1358 = vst [vmem:[%s236 + $0x60] sm:$0xff] %v1342
        %1359 = vst [vmem:[%s236 + $0x68] sm:$0xff] %v1343
        %1360 = vst [vmem:[%s236 + $0x70] sm:$0xff] %v1344
        %1361 = vst [vmem:[%s236 + $0x78] sm:$0xff] %v1345
        %s1362 = sand.u32 %s113, 1
        %s1363 = scalar_lea.sflag [#allocation4], %s1362
        %s1364 = sand.u32 %s113, 1
        %s1365 = smul.addr %s1364, 128
        %s1366 = scalar_lea.vmem [#allocation8], %s1365
        // Predicated region
        $region45: #{tpu_custom_call.1} parent=31 // pred_check
          %p1367 = pneg %p123
        $region46: #{tpu_custom_call.1} parent=31 // pred_check_branch
          %1369 = sbr.rel (%p1367) target = $region48
        $region47: #{tpu_custom_call.1} parent=31 // pred_region
          %s1371 = ssub.s32 2048, 2048
          %1372 = vsyncadd %s1363, %s1371
          %s1373 = smul.addr %s25, 16
          %s1374 = sadd.s32 %s26, %s1373
          %s1375 = smul.addr %s1374, 128
          %s1376 = scalar_lea.hbm %s3, %s1375
          %s1377 = sshll.u32 %s1366, 4
          %s1378 = int_to_ptr.vmem [resolvable:$true] %s1377
          %1383 = dma.vmem_to_hbm [thread:$0]  %s1378, 2048, %s1376, %s1363, 128, 128, 8
        $region48: #{tpu_custom_call.1} parent=31 // pred_fallthru
          _
      $region32: #{tpu_custom_call.1} parent=5 // pred_fallthru
        _
      %p1384 = scmp.le.s32.totalorder 2, %s16
      // Predicated region
      $region49: #{tpu_custom_call.1} parent=5 // pred_check
        %p1385 = pneg %p1384
      $region50: #{tpu_custom_call.1} parent=5 // pred_check_branch
        %1387 = sbr.rel (%p1385) target = $region52
      $region51: #{tpu_custom_call.1} parent=5 // pred_region
        %s1388 = ssub.s32 %s16, 2
        // Predicated region
        $region53: #{tpu_custom_call.1} parent=51 // pred_check
          %p1389 = pneg %p129
        $region54: #{tpu_custom_call.1} parent=51 // pred_check_branch
          %1391 = sbr.rel (%p1389) target = $region56
        $region55: #{tpu_custom_call.1} parent=51 // pred_region
          %s1392 = sand.u32 %s114, 1
          %s1393 = scalar_lea.sflag [#allocation4], %s1392
          %s1394 = sand.u32 %s114, 1
          %s1395 = smul.addr %s1394, 128
          %s1396 = scalar_lea.vmem [#allocation8], %s1395
          %1397 = dma.done %s1393, 2048
        $region56: #{tpu_custom_call.1} parent=51 // pred_fallthru
          _
      $region52: #{tpu_custom_call.1} parent=5 // pred_fallthru
        _
    $region6: #{tpu_custom_call.1} parent=1 // loop_footer
      %s20 = sadd.s32 1, %s16
    $region7: #{tpu_custom_call.1} parent=1 // loop_footer_branch
      %15 = sbr.rel target = $region3
    $region8: #{tpu_custom_call.1} parent=1 // loop_exit
      _
    %1398 = vsyncpa [#allocation3], 1
    %s1399 = scalar_lea.sflag [#allocation3], 1
    %1400 = vsyncpa %s1399, 1
    %1401 = vsyncpa [#allocation6], 1
    %1402 = vsyncpa [#allocation4], 1
    %s1403 = scalar_lea.sflag [#allocation4], 1
    %1404 = vsyncpa %s1403, 1

</llo_original>
